<compile_context>
chip_gen: v7x
topology: tpu7x:2x2x1
jax: 0.10.0
libtpu: 0.0.40
codegen_flags: <defaults>
</compile_context>

<pallas_src>
import jax
import jax.numpy as jnp
from jax.experimental import pallas as pl
from jax.experimental.pallas import tpu as pltpu

_LANES = 128


def _cosine_similarity_kernel(pred_ref, gt_ref, out_ref):
    # cos(p)*cos(g) + sin(p)*sin(g) == cos(p - g)
    p = pred_ref[...].astype(jnp.float32)
    g = gt_ref[...].astype(jnp.float32)
    out_ref[...] = jnp.cos(p - g).astype(out_ref.dtype)


def _round_up(x, m):
    return ((x + m - 1) // m) * m


def _choose_tile_rows(rows, itemsize, *, min_grid_steps=2):
    """Pick the block height (rows of 128 lanes) for one kernel invocation."""
    # ~2 MiB per array per block.  Double-buffered working set:
    #   3 arrays x 2 buffers x 2 MiB = 12 MiB  (< 32 MiB requested limit,
    #   << v7x's 64 MiB physical VMEM).
    target_block_bytes = 2 << 20
    max_tile_rows = max(8, (target_block_bytes // (_LANES * itemsize)) // 8 * 8)

    if rows > max_tile_rows:
        return max_tile_rows

    # Small/medium inputs: ensure at least `min_grid_steps` grid steps so the
    # "parallel" axis actually shards across v7x's two TensorCores.  Costs
    # nothing on single-TC v5e/v6e.
    if rows >= 8 * min_grid_steps:
        return min(max_tile_rows, _round_up(pl.cdiv(rows, min_grid_steps), 8))

    # Tiny input: single full-extent block (always a legal block shape).
    return rows


def _cosine_kernel_call(p2, g2, out_dtype):
    rows, lanes = p2.shape
    assert lanes == _LANES
    in_itemsize = jnp.dtype(p2.dtype).itemsize
    out_itemsize = jnp.dtype(out_dtype).itemsize

    tile_rows = _choose_tile_rows(rows, in_itemsize)
    grid = (pl.cdiv(rows, tile_rows),)
    spec = pl.BlockSpec((tile_rows, _LANES), lambda i: (i, 0))

    n_elems = rows * _LANES
    cost = pl.CostEstimate(
        flops=n_elems,                                   # one subtract per element
        transcendentals=n_elems,                         # one cos per element
        bytes_accessed=n_elems * (2 * in_itemsize + out_itemsize),
    )

    return pl.pallas_call(
        _cosine_similarity_kernel,
        out_shape=jax.ShapeDtypeStruct((rows, _LANES), out_dtype),
        grid_spec=pltpu.PrefetchScalarGridSpec(
            num_scalar_prefetch=0,
            grid=grid,
            in_specs=[spec, spec],
            out_specs=spec,
        ),
        compiler_params=pltpu.CompilerParams(
            dimension_semantics=("parallel",),
            vmem_limit_bytes=32 << 20,
        ),
        cost_estimate=cost,
    )(p2, g2)


def cosine_similarity(pred, gt):
    """Elementwise cos(pred)*cos(gt) + sin(pred)*sin(gt) (== cos(pred - gt)).

    Note: despite the module's name, this is the elementwise depth-loss term,
    not torch.nn.CosineSimilarity (dot/norm over a dimension).
    """
    assert pred.shape == gt.shape, "pred/gt must have identical shapes"
    orig_shape = pred.shape
    out_dtype = pred.dtype

    total = pred.size
    aligned_rows = total // _LANES
    aligned = aligned_rows * _LANES

    p_flat = jnp.ravel(pred)
    g_flat = jnp.ravel(gt)

    parts = []
    if aligned > 0:
        p2 = p_flat[:aligned].reshape(aligned_rows, _LANES)
        g2 = g_flat[:aligned].reshape(aligned_rows, _LANES)
        out2 = _cosine_kernel_call(p2, g2, out_dtype)
        parts.append(out2.reshape(-1))
    if aligned < total:
        # Rare unaligned tail (<128 elements): plain JAX, avoids materializing
        # padded copies (extra HBM read+write) of both inputs.
        p_t = p_flat[aligned:].astype(jnp.float32)
        g_t = g_flat[aligned:].astype(jnp.float32)
        parts.append(jnp.cos(p_t - g_t).astype(out_dtype))

    out_flat = parts[0] if len(parts) == 1 else jnp.concatenate(parts)
    return out_flat.reshape(orig_shape)


if __name__ == "__main__":
    key = jax.random.PRNGKey(0)
    k1, k2 = jax.random.split(key)
    # NCHW, small shapes matching the module's use (dense per-pixel loss term)
    pred = jax.random.normal(k1, (2, 4, 16, 16), dtype=jnp.float32)
    gt = jax.random.normal(k2, (2, 4, 16, 16), dtype=jnp.float32)

    out = cosine_similarity(pred, gt)
    out = jax.block_until_ready(out)

    # sanity check against the original 4-trig formula (pure JAX reference)
    ref = jnp.cos(pred) * jnp.cos(gt) + jnp.sin(pred) * jnp.sin(gt)
    assert out.shape == pred.shape
    assert out.dtype == pred.dtype
    assert jnp.allclose(out, ref, atol=1e-5, rtol=1e-5)

    print("KERNEL_OK")
</pallas_src>

<mosaic_0001>
module attributes {stable_mosaic.version = 11 : i64} {
  func.func @_cosine_similarity_kernel(%arg0: i32, %arg1: memref<8x128xf32, #tpu.memory_space<vmem>>, %arg2: memref<8x128xf32, #tpu.memory_space<vmem>>, %arg3: memref<8x128xf32, #tpu.memory_space<vmem>>) attributes {dimension_semantics = [#tpu.dimension_semantics<parallel>], iteration_bounds = array<i64: 2>, scalar_prefetch = 0 : i64, scratch_operands = 0 : i64, tpu.core_type = #tpu.core_type<tc>, window_params = [{transform_indices = @transform_0, window_bounds = array<i64: 8, 128>}, {transform_indices = @transform_1, window_bounds = array<i64: 8, 128>}, {transform_indices = @transform_2, window_bounds = array<i64: 8, 128>}]} {
    %c0 = arith.constant 0 : index
    %c0_0 = arith.constant 0 : index
    %0 = vector.load %arg1[%c0, %c0_0] : memref<8x128xf32, #tpu.memory_space<vmem>>, vector<8x128xf32>
    %c0_1 = arith.constant 0 : index
    %c0_2 = arith.constant 0 : index
    %1 = vector.load %arg2[%c0_1, %c0_2] : memref<8x128xf32, #tpu.memory_space<vmem>>, vector<8x128xf32>
    %2 = arith.subf %0, %1 : vector<8x128xf32>
    %3 = math.cos %2 : vector<8x128xf32>
    %c0_3 = arith.constant 0 : index
    %c0_4 = arith.constant 0 : index
    %4 = vector.load %arg3[%c0_3, %c0_4] : memref<8x128xf32, #tpu.memory_space<vmem>>, vector<8x128xf32>
    tpu.vector_store %arg3[%c0_3, %c0_4], %3 {strides = array<i32>} : memref<8x128xf32, #tpu.memory_space<vmem>>, vector<8x128xf32>,
    return
  }
  func.func @transform_0(%arg0: i32) -> (i32, i32) {
    %c0_i32 = arith.constant 0 : i32
    %c0_i32_0 = arith.constant 0 : i32
    return %arg0, %c0_i32 : i32, i32
  }
  func.func @transform_1(%arg0: i32) -> (i32, i32) {
    %c0_i32 = arith.constant 0 : i32
    %c0_i32_0 = arith.constant 0 : i32
    return %arg0, %c0_i32 : i32, i32
  }
  func.func @transform_2(%arg0: i32) -> (i32, i32) {
    %c0_i32 = arith.constant 0 : i32
    %c0_i32_0 = arith.constant 0 : i32
    return %arg0, %c0_i32 : i32, i32
  }
}

</mosaic_0001>

<llo_original>
// kernel: tpu_custom_call.1
$region0: #{tpu_custom_call.1}
  #allocation0 [shape = 'u32[]', space=smem, size = 0x4, offset = 0x4, fixed_abs, tag = 'smem constant byte address 0x4 - core index']
  #allocation1 [shape = 'u32[144,128]{1,0:T(1,128)}', space=vmem, size = 0x12000, scoped, tag = 'internal scratch']
  %s0 = inlined_call_operand.hbm [shape: f32[16,128], index: 0, kind: input, shape index: {}]
  %s1 = inlined_call_operand.hbm [shape: f32[16,128], index: 1, kind: input, shape index: {}]
  %s2 = inlined_call_operand.hbm [shape: f32[16,128], index: 2, kind: output, shape index: {}]
  %s3 = sld [smem:[#allocation0]]
  $region49: #{tpu_custom_call.1} parent=0
    _
  %s5 = ssub.s32 1, %s3
  %s6 = scalar_select 0, %s5, %s3
  $region1: #{tpu_custom_call.1} parent=0
    #allocation2 [shape = 'u8[8192]{0}', space=vmem, size = 0x2000, scoped, tag = 'input window, operand 0']
    #allocation3 [shape = 's32[2]{0}', space=sflag, size = 0x8, scoped, tag = 'scoped memory for tpu_custom_call.1']
    #allocation4 [shape = 's32[2]{0}', space=sflag, size = 0x8, scoped, tag = 'scoped memory for tpu_custom_call.1']
    #allocation5 [shape = 'u8[8192]{0}', space=vmem, size = 0x2000, scoped, tag = 'input window, operand 1']
    #allocation6 [shape = 's32[2]{0}', space=sflag, size = 0x8, scoped, tag = 'scoped memory for tpu_custom_call.1']
    #allocation7 [shape = 'u8[8192]{0}', space=vmem, size = 0x2000, scoped, tag = 'output window, operand 0']
    %7 = vsyncpa [#allocation3], 0
    %s8 = scalar_lea.sflag [#allocation3], 1
    %9 = vsyncpa %s8, 0
    %10 = vsyncpa [#allocation6], 0
    %s11 = scalar_lea.sflag [#allocation6], 1
    %12 = vsyncpa %s11, 0
    %13 = vsyncpa [#allocation4], 0
    %s14 = scalar_lea.sflag [#allocation4], 1
    %15 = vsyncpa %s14, 0
    loop: start=0, step=1, limit=4
    $region2: #{tpu_custom_call.1} parent=1 // loop_pre_header
      _
    $region3: #{tpu_custom_call.1} parent=1 // loop_header
      %s17 = sphi 0, %s21
      %p18 = scmp.ge.s32.totalorder %s17, 4
      %s27 = sphi 0, %s29
      %s30 = sphi 0, %s27
      %s31 = sphi 0, %s30
      %s47 = sphi 0, %s31
      %s53 = sphi 0, %s55
      %s56 = sphi 0, %s53
      %s57 = sphi 0, %s56
      %s73 = sphi 0, %s57
      %s79 = sphi 0, %s81
      %s82 = sphi 0, %s79
      %s83 = sphi 0, %s82
      %s99 = sphi 0, %s83
    $region4: #{tpu_custom_call.1} parent=1 // loop_header_branch
      %20 = sbr.rel (%p18) target = $region8
    $region5: #{tpu_custom_call.1} parent=1 // loop_body
      %s22 = ssub.s32 %s17, 1
      %s23 = ssub.s32 %s17, 2
      %s24 = sadd.s32 %s17, 1
      %s25 = ssub.s32 %s17, %s24
      %p26 = scmp.eq.s32.totalorder %s25, 0
      %s28 = sadd.s32 %s27, 1
      %s29 = scalar_select %p26, %s27, %s28
      %p32 = pneg %p26
      %p33 = scmp.eq.s32.totalorder %s17, 1
      %p34 = por %p32, %p33
      %p35 = scmp.ne.s32.totalorder %s27, %s30
      %p36 = scmp.eq.s32.totalorder %s17, 0
      %p37 = por %p35, %p36
      %p38 = scmp.ne.s32.totalorder %s27, %s30
      %p39 = scmp.eq.s32.totalorder %s22, 1
      %p40 = por %p38, %p39
      %p41 = scmp.ne.s32.totalorder %s30, %s31
      %p42 = scmp.eq.s32.totalorder %s22, 0
      %p43 = por %p41, %p42
      %p44 = scmp.ne.s32.totalorder %s30, %s31
      %p45 = scmp.eq.s32.totalorder %s23, 1
      %p46 = por %p44, %p45
      %p48 = scmp.ne.s32.totalorder %s31, %s47
      %p49 = scmp.eq.s32.totalorder %s23, 0
      %p50 = por %p48, %p49
      %s51 = ssub.s32 %s17, %s24
      %p52 = scmp.eq.s32.totalorder %s51, 0
      %s54 = sadd.s32 %s53, 1
      %s55 = scalar_select %p52, %s53, %s54
      %p58 = pneg %p52
      %p59 = scmp.eq.s32.totalorder %s17, 1
      %p60 = por %p58, %p59
      %p61 = scmp.ne.s32.totalorder %s53, %s56
      %p62 = scmp.eq.s32.totalorder %s17, 0
      %p63 = por %p61, %p62
      %p64 = scmp.ne.s32.totalorder %s53, %s56
      %p65 = scmp.eq.s32.totalorder %s22, 1
      %p66 = por %p64, %p65
      %p67 = scmp.ne.s32.totalorder %s56, %s57
      %p68 = scmp.eq.s32.totalorder %s22, 0
      %p69 = por %p67, %p68
      %p70 = scmp.ne.s32.totalorder %s56, %s57
      %p71 = scmp.eq.s32.totalorder %s23, 1
      %p72 = por %p70, %p71
      %p74 = scmp.ne.s32.totalorder %s57, %s73
      %p75 = scmp.eq.s32.totalorder %s23, 0
      %p76 = por %p74, %p75
      %s77 = ssub.s32 %s17, %s24
      %p78 = scmp.eq.s32.totalorder %s77, 0
      %s80 = sadd.s32 %s79, 1
      %s81 = scalar_select %p78, %s79, %s80
      %p84 = pneg %p78
      %p85 = scmp.eq.s32.totalorder %s17, 1
      %p86 = por %p84, %p85
      %p87 = scmp.ne.s32.totalorder %s79, %s82
      %p88 = scmp.eq.s32.totalorder %s17, 0
      %p89 = por %p87, %p88
      %p90 = scmp.ne.s32.totalorder %s79, %s82
      %p91 = scmp.eq.s32.totalorder %s22, 1
      %p92 = por %p90, %p91
      %p93 = scmp.ne.s32.totalorder %s82, %s83
      %p94 = scmp.eq.s32.totalorder %s22, 0
      %p95 = por %p93, %p94
      %p96 = scmp.ne.s32.totalorder %s82, %s83
      %p97 = scmp.eq.s32.totalorder %s23, 1
      %p98 = por %p96, %p97
      %p100 = scmp.ne.s32.totalorder %s83, %s99
      %p101 = scmp.eq.s32.totalorder %s23, 0
      %p102 = por %p100, %p101
      %p103 = scmp.le.s32.totalorder 1, %s17
      %p104 = scmp.lt.s32.totalorder %s17, 3
      %p105 = pnand %p103, %p104
      %p106 = pneg %p105
      // Predicated region
      $region9: #{tpu_custom_call.1} parent=5 // pred_check
        _
      $region10: #{tpu_custom_call.1} parent=5 // pred_check_branch
        %108 = sbr.rel (%p105) target = $region12
      $region11: #{tpu_custom_call.1} parent=5 // pred_region
        %s109 = ssub.s32 %s17, 1
      $region12: #{tpu_custom_call.1} parent=5 // pred_fallthru
        _
      %p110 = scmp.lt.s32.totalorder %s17, 2
      // Predicated region
      $region13: #{tpu_custom_call.1} parent=5 // pred_check
        %p111 = pneg %p110
      $region14: #{tpu_custom_call.1} parent=5 // pred_check_branch
        %113 = sbr.rel (%p111) target = $region16
      $region15: #{tpu_custom_call.1} parent=5 // pred_region
        // Predicated region
        $region17: #{tpu_custom_call.1} parent=15 // pred_check
          %p114 = pneg %p37
        $region18: #{tpu_custom_call.1} parent=15 // pred_check_branch
          %116 = sbr.rel (%p114) target = $region20
        $region19: #{tpu_custom_call.1} parent=15 // pred_region
          %s117 = sand.u32 %s27, 1
          %s118 = scalar_lea.sflag [#allocation3], %s117
          %s119 = sand.u32 %s27, 1
          %s120 = smul.addr %s119, 8
          %s121 = scalar_lea.vmem [#allocation2], %s120
          %s123 = ssub.s32 128, 128
          %124 = vsyncadd %s118, %s123
          %s125 = smul.addr %s17, 128
          %s126 = scalar_lea.hbm %s0, %s125
          %s128 = sshll.u32 %s121, 4
          %s129 = int_to_ptr.vmem [resolvable:$true] %s128
          %131 = dma.hbm_to_vmem [thread:$0]  %s126, 128, %s129, %s118
        $region20: #{tpu_custom_call.1} parent=15 // pred_fallthru
          _
        // Predicated region
        $region21: #{tpu_custom_call.1} parent=15 // pred_check
          %p132 = pneg %p63
        $region22: #{tpu_custom_call.1} parent=15 // pred_check_branch
          %134 = sbr.rel (%p132) target = $region24
        $region23: #{tpu_custom_call.1} parent=15 // pred_region
          %s135 = sand.u32 %s53, 1
          %s136 = scalar_lea.sflag [#allocation6], %s135
          %s137 = sand.u32 %s53, 1
          %s138 = smul.addr %s137, 8
          %s139 = scalar_lea.vmem [#allocation5], %s138
          %s141 = ssub.s32 128, 128
          %142 = vsyncadd %s136, %s141
          %s143 = smul.addr %s17, 128
          %s144 = scalar_lea.hbm %s1, %s143
          %s146 = sshll.u32 %s139, 4
          %s147 = int_to_ptr.vmem [resolvable:$true] %s146
          %149 = dma.hbm_to_vmem [thread:$0]  %s144, 128, %s147, %s136
        $region24: #{tpu_custom_call.1} parent=15 // pred_fallthru
          _
      $region16: #{tpu_custom_call.1} parent=5 // pred_fallthru
        _
      %p150 = scmp.le.s32.totalorder 1, %s17
      %p151 = scmp.lt.s32.totalorder %s17, 3
      %p152 = pnand %p150, %p151
      %p153 = pneg %p152
      // Predicated region
      $region25: #{tpu_custom_call.1} parent=5 // pred_check
        _
      $region26: #{tpu_custom_call.1} parent=5 // pred_check_branch
        %155 = sbr.rel (%p152) target = $region28
      $region27: #{tpu_custom_call.1} parent=5 // pred_region
        %s156 = ssub.s32 %s17, 1
        %s157 = sand.u32 %s30, 1
        %s158 = scalar_lea.sflag [#allocation3], %s157
        %s159 = sand.u32 %s30, 1
        %s160 = smul.addr %s159, 8
        %s161 = scalar_lea.vmem [#allocation2], %s160
        // Predicated region
        $region29: #{tpu_custom_call.1} parent=27 // pred_check
          %p162 = pneg %p43
        $region30: #{tpu_custom_call.1} parent=27 // pred_check_branch
          %164 = sbr.rel (%p162) target = $region32
        $region31: #{tpu_custom_call.1} parent=27 // pred_region
          %165 = dma.done %s158, 128
        $region32: #{tpu_custom_call.1} parent=27 // pred_fallthru
          _
        %s166 = sand.u32 %s56, 1
        %s167 = scalar_lea.sflag [#allocation6], %s166
        %s168 = sand.u32 %s56, 1
        %s169 = smul.addr %s168, 8
        %s170 = scalar_lea.vmem [#allocation5], %s169
        // Predicated region
        $region33: #{tpu_custom_call.1} parent=27 // pred_check
          %p171 = pneg %p69
        $region34: #{tpu_custom_call.1} parent=27 // pred_check_branch
          %173 = sbr.rel (%p171) target = $region36
        $region35: #{tpu_custom_call.1} parent=27 // pred_region
          %174 = dma.done %s167, 128
        $region36: #{tpu_custom_call.1} parent=27 // pred_fallthru
          _
        %s175 = sand.u32 %s30, 1
        %s176 = scalar_lea.sflag [#allocation3], %s175
        %s177 = sand.u32 %s30, 1
        %s178 = smul.addr %s177, 8
        %s179 = scalar_lea.vmem [#allocation2], %s178
        %p180 = pneg %p43
        %p181 = pneg %p40
        %s182 = sand.u32 %s56, 1
        %s183 = scalar_lea.sflag [#allocation6], %s182
        %s184 = sand.u32 %s56, 1
        %s185 = smul.addr %s184, 8
        %s186 = scalar_lea.vmem [#allocation5], %s185
        %p187 = pneg %p69
        %p188 = pneg %p66
        %p189 = pneg %p95
        %p190 = pneg %p92
        %s191 = sand.u32 %s82, 1
        %s192 = scalar_lea.sflag [#allocation4], %s191
        %s193 = sand.u32 %s82, 1
        %s194 = smul.addr %s193, 8
        %s195 = scalar_lea.vmem [#allocation7], %s194
        %v196 = vld [vmem:[%s161] sm:$0xff]
        %v197 = vld [vmem:[%s170] sm:$0xff]
        %v198 = vsub.f32 %v196, %v197
        %v199 = vand.u32 2147483647, %v198
        %vm200 = vcmp.le.f32.partialorder %v199, 0.7853982
        %vm201 = vcmp.lt.s32.totalorder %v198, 0
        %v202 = vand.u32 %v198, 2139095040
        %v203 = vshrl.u32 %v202, 23
        %v204 = vsub.s32 %v203, 127
        %v205 = vand.u32 2147483647, %v198
        %v206 = vand.u32 %v205, 8388607
        %v207 = vor.u32 %v206, 8388608
        %v208 = vsub.s32 0, %v207
        %v209 = vadd.s32 %v204, 1
        %vm210 = vcmp.gt.s32.totalorder %v209, 0
        %v211 = vsel %vm210, %v209, 0
        %v212 = vshrl.u32 %v211, 5
        %v213 = vand.u32 %v211, 31
        %v214 = vsub.s32 32, %v213
        %v215 = vshrl.u32 683565275, %v214
        %v216 = vshll.u32 683565275, %v213
        %v217 = vshrl.u32 2475754826, %v214
        %v218 = vor.u32 %v216, %v217
        %v219 = vshll.u32 2475754826, %v213
        %v220 = vshrl.u32 2131351028, %v214
        %v221 = vor.u32 %v219, %v220
        %v222 = vshll.u32 2131351028, %v213
        %v223 = vshrl.u32 2102212464, %v214
        %v224 = vor.u32 %v222, %v223
        %v225 = vshll.u32 2102212464, %v213
        %v226 = vshrl.u32 920167782, %v214
        %v227 = vor.u32 %v225, %v226
        %v228 = vshll.u32 920167782, %v213
        %v229 = vshrl.u32 1326507024, %v214
        %v230 = vor.u32 %v228, %v229
        %vm231 = vcmp.lt.s32.totalorder %v212, 1
        %vm232 = vcmp.lt.s32.totalorder %v212, 2
        %vm233 = vcmp.lt.s32.totalorder %v212, 3
        %vm234 = vcmp.lt.s32.totalorder %v212, 4
        %v235 = vsel %vm231, %v215, %v218
        %v236 = vsel %vm234, %v224, 2102212464
        %v237 = vsel %vm233, %v221, %v236
        %v238 = vsel %vm232, %v235, %v237
        %v239 = vsel %vm231, %v218, %v221
        %v240 = vsel %vm234, %v227, 920167782
        %v241 = vsel %vm233, %v224, %v240
        %v242 = vsel %vm232, %v239, %v241
        %v243 = vsel %vm231, %v221, %v224
        %v244 = vsel %vm234, %v230, 1326507024
        %v245 = vsel %vm233, %v227, %v244
        %v246 = vsel %vm232, %v243, %v245
        %v247 = vshll.u32 %v207, 8
        %v248 = vmul.u32.u64.compose %v247, %v246
        %v249 = vextract.low.u32 %v248
        %v250 = vextract.high.u32 %v248
        %v251 = vmul.u32.u64.compose %v247, %v242
        %v252 = vextract.low.u32 %v251
        %v253 = vextract.high.u32 %v251
        %v254 = vmul.u32 %v247, %v238
        %v255 = vadd.s32 %v250, %v252
        %vm256 = vc.u32 %v250, %v252
        %v257 = vadd.s32 %v253, 1
        %v258 = vsel %vm256, %v257, %v253
        %v259 = vadd.s32 %v254, %v258
        %v260 = vadd.s32 %v259, 536870912
        %v261 = vshrl.u32 %v260, 30
        %v262 = vshll.u32 %v261, 30
        %v263 = vsub.s32 %v259, %v262
        %vm264 = vcmp.lt.s32.totalorder %v263, 0
        %v265 = vsub.s32 0, %v263
        %v266 = vsel %vm264, %v265, %v263
        %v267 = vclz %v266
        %v268 = vsub.s32 %v267, 2
        %vm269 = vcmp.gt.s32.totalorder 0, %v268
        %v270 = vsel %vm269, 0, %v268
        %v271 = vsub.s32 32, %v270
        %v272 = vshll.u32 %v263, %v270
        %v273 = vshrl.u32 %v255, %v271
        %v274 = vor.u32 %v272, %v273
        %v275 = vsub.s32 4294967266, %v270
        %v276 = vadd.s32 %v275, 127
        %v277 = vshll.u32 %v276, 23
        %v278 = vor.u32 4788187, %v277
        %v279 = vand.u32 2147483647, %v278
        %v281 = vcvt.s32.f32 %v274
        %v282 = vmul.f32 %v281, %v279
        %v283 = vxor.u32 %v282, 2147483648
        %v284 = vsel %vm201, %v283, %v282
        %v285 = vsub.s32 4, %v261
        %v286 = vsel %vm201, %v285, %v261
        %v287 = vsel %vm200, %v198, %v284
        %v288 = vsel %vm200, 0, %v286
        %v289 = vcosq.f32.pop %v287
        %v290 = vsinq.f32.pop %v287
        %vm291 = vweird.f32 %v198
        %v292 = vand.u32 %v288, 3
        %vm293 = vcmp.lt.s32.totalorder %v292, 2
        %vm294 = vcmp.eq.s32.totalorder %v292, 0
        %v295 = vxor.u32 %v290, 2147483648
        %v296 = vsel %vm294, %v289, %v295
        %vm297 = vcmp.eq.s32.totalorder %v292, 2
        %v298 = vxor.u32 %v289, 2147483648
        %v299 = vsel %vm297, %v298, %v290
        %v300 = vsel %vm293, %v296, %v299
        %v301 = vsel %vm291, nan, %v300
        %302 = vst [vmem:[%s195] sm:$0xff] %v301
        %s303 = sand.u32 %s82, 1
        %s304 = scalar_lea.sflag [#allocation4], %s303
        %s305 = sand.u32 %s82, 1
        %s306 = smul.addr %s305, 8
        %s307 = scalar_lea.vmem [#allocation7], %s306
        // Predicated region
        $region37: #{tpu_custom_call.1} parent=27 // pred_check
          %p308 = pneg %p92
        $region38: #{tpu_custom_call.1} parent=27 // pred_check_branch
          %310 = sbr.rel (%p308) target = $region40
        $region39: #{tpu_custom_call.1} parent=27 // pred_region
          %s312 = ssub.s32 128, 128
          %313 = vsyncadd %s304, %s312
          %s314 = smul.addr %s22, 128
          %s315 = scalar_lea.hbm %s2, %s314
          %s317 = sshll.u32 %s307, 4
          %s318 = int_to_ptr.vmem [resolvable:$true] %s317
          %320 = dma.vmem_to_hbm [thread:$0]  %s318, 128, %s315, %s304
        $region40: #{tpu_custom_call.1} parent=27 // pred_fallthru
          _
      $region28: #{tpu_custom_call.1} parent=5 // pred_fallthru
        _
      %p321 = scmp.le.s32.totalorder 2, %s17
      // Predicated region
      $region41: #{tpu_custom_call.1} parent=5 // pred_check
        %p322 = pneg %p321
      $region42: #{tpu_custom_call.1} parent=5 // pred_check_branch
        %324 = sbr.rel (%p322) target = $region44
      $region43: #{tpu_custom_call.1} parent=5 // pred_region
        %s325 = ssub.s32 %s17, 2
        // Predicated region
        $region45: #{tpu_custom_call.1} parent=43 // pred_check
          %p326 = pneg %p98
        $region46: #{tpu_custom_call.1} parent=43 // pred_check_branch
          %328 = sbr.rel (%p326) target = $region48
        $region47: #{tpu_custom_call.1} parent=43 // pred_region
          %s329 = sand.u32 %s83, 1
          %s330 = scalar_lea.sflag [#allocation4], %s329
          %s331 = sand.u32 %s83, 1
          %s332 = smul.addr %s331, 8
          %s333 = scalar_lea.vmem [#allocation7], %s332
          %334 = dma.done %s330, 128
        $region48: #{tpu_custom_call.1} parent=43 // pred_fallthru
          _
      $region44: #{tpu_custom_call.1} parent=5 // pred_fallthru
        _
    $region6: #{tpu_custom_call.1} parent=1 // loop_footer
      %s21 = sadd.s32 1, %s17
    $region7: #{tpu_custom_call.1} parent=1 // loop_footer_branch
      %16 = sbr.rel target = $region3
    $region8: #{tpu_custom_call.1} parent=1 // loop_exit
      _
    %335 = vsyncpa [#allocation3], 1
    %s336 = scalar_lea.sflag [#allocation3], 1
    %337 = vsyncpa %s336, 1
    %338 = vsyncpa [#allocation6], 1
    %s339 = scalar_lea.sflag [#allocation6], 1
    %340 = vsyncpa %s339, 1
    %341 = vsyncpa [#allocation4], 1
    %s342 = scalar_lea.sflag [#allocation4], 1
    %343 = vsyncpa %s342, 1

</llo_original>
